<compile_context>
chip_gen: v7x
topology: tpu7x:2x2x1
jax: 0.10.0
libtpu: 0.0.40
codegen_flags: <defaults>
</compile_context>

<pallas_src>
import math

import jax
import jax.numpy as jnp
from jax import lax
from jax.experimental import pallas as pl
from jax.experimental.pallas import tpu as pltpu


def _attention_kernel(q_ref, k_ref, v_ref, mask_ref, ctx_ref, attn_ref):
    # Blocks: q (G, bq, D), k/v (G, Sk, D), mask (G or 1, bq, Sk) bool,
    # outputs: ctx (G, bq, D), attn (G, bq, Sk).
    q = q_ref[...]
    k = k_ref[...]
    v = v_ref[...]
    mask = mask_ref[...]  # bool, True => masked out

    d_k = k.shape[-1]
    scale = 1.0 / math.sqrt(d_k)

    if q.dtype == jnp.float32:
        # f32 inputs: fold the scale into Q (bq*D muls, no (bq,Sk) pass, no
        # operand copy since Q is already f32).
        q_in = q * jnp.float32(scale)
        post_scale = None
    else:
        # bf16 etc.: keep the operands narrow so the MXU runs at full rate;
        # scale the f32 scores instead (avoids mantissa loss in a narrow Q).
        q_in = q
        post_scale = jnp.float32(scale)

    # scores = Q @ K^T: contract D on both operands, batched over the head
    # group; the MXU takes the transposed operand for free (no XLU transpose).
    scores = lax.dot_general(
        q_in,
        k,
        dimension_numbers=(((2,), (2,)), ((0,), (0,))),
        preferred_element_type=jnp.float32,
    )  # (G, bq, Sk) f32
    if post_scale is not None:
        scores = scores * post_scale

    # masked_fill_(attn_mask, -1e9): single select with the bool mask
    # (broadcasts over the head group when the mask is head-shared).
    scores = jnp.where(mask, jnp.float32(-1000000000.0), scores)

    # Numerically-stable softmax along Sk.
    row_max = jnp.max(scores, axis=-1, keepdims=True)
    p = jnp.exp(scores - row_max)
    denom = jnp.sum(p, axis=-1, keepdims=True)

    # Reciprocal on the EUP slot + one Newton step on the tiny (G, bq, 1)
    # column to recover ~f32 accuracy (keeps the 1e-5 attn tolerance).
    inv = pl.reciprocal(denom, approx=True)
    inv = inv * (jnp.float32(2.0) - denom * inv)

    # Normalize and cast once; the same tensor is stored as attn and drives
    # the PV matmul (bf16 inputs -> bf16 MXU, f32 -> no cast at all).
    attn = (p * inv).astype(attn_ref.dtype)
    attn_ref[...] = attn

    context = lax.dot_general(
        attn.astype(v.dtype),
        v,
        dimension_numbers=(((2,), (1,)), ((0,), (0,))),
        preferred_element_type=jnp.float32,
    )  # (G, bq, D)
    ctx_ref[...] = context.astype(ctx_ref.dtype)
    # TODO(synk): evaluate a lane-dense (block_h, block_q*D) ctx store for
    # D < 128 once a bundle dump confirms the relayout is cheaper than the
    # masked vst.msk stores.


def _vmem_capacity_bytes():
    """Best-effort per-core VMEM capacity; conservative fallback (v7x)."""
    try:
        info = pltpu.get_tpu_info()
        cap = getattr(info, "vmem_capacity_bytes", None)
        if cap:
            return int(cap)
    except Exception:
        pass
    return 64 * 1024 * 1024


def _choose_tiles(bh, sq, sk, d, itemsize, budget_bytes, h_div):
    """Pick (heads-per-step, q-rows-per-step) under a per-generation budget.

    `h_div` constrains the head packing: when the mask is shared across heads
    the head group must not cross a batch boundary, so block_h must divide H.
    """

    def step_bytes(g, bq):
        io = g * (
            bq * d * itemsize        # q tile
            + 2 * sk * d * itemsize  # k + v tiles (resident across inner loop)
            + bq * sk * 1            # bool mask tile
            + bq * d * itemsize      # ctx out tile
            + bq * sk * itemsize     # attn out tile
        )
        interm = 3 * g * bq * sk * 4  # scores / exp / attn live in f32
        return 2 * io + interm        # x2: double-buffered pipeline

    # q tile: prefer 512/256 rows (amortizes ~0.35us/step, feeds the MXU big
    # tiles), sublane-aligned; fall back to the full (possibly odd) Sq.
    block_q = sq
    for cand in (512, 256, 128, 64, 32, 16, 8):
        if sq % cand == 0:
            block_q = cand
            break
    while (
        block_q > 8
        and (block_q // 2) % 8 == 0
        and sq % (block_q // 2) == 0
        and step_bytes(1, block_q) > budget_bytes
    ):
        block_q //= 2

    if step_bytes(1, block_q) > budget_bytes:
        raise ValueError(
            "ScaledDotProductAttention tiles do not fit in VMEM for "
            f"Sq={sq}, Sk={sk}, D={d}; a K-tiled (flash-style) kernel is "
            "required for this shape."
        )

    # Pack heads per step when the per-head work is tiny, but keep the outer
    # grid axis >= 2 so v7x's two TensorCores shard on heads (preserving the
    # per-core K/V residency) rather than splitting the q axis.
    block_h = 1
    for cand in (8, 4, 2):
        if (
            h_div % cand == 0
            and bh // cand >= 2
            and step_bytes(cand, block_q) <= budget_bytes
        ):
            block_h = cand
            break
    return block_h, block_q


def scaled_dot_product_attention(Q, K, V, attn_mask):
    """Pallas TPU implementation of ScaledDotProductAttention.forward.

    Args:
      Q: (B, H, Sq, D)
      K: (B, H, Sk, D)
      V: (B, H, Sk, D)
      attn_mask: bool array broadcastable to (B, H, Sq, Sk) (True => mask out);
        2-D (Sq, Sk) and 4-D masks are accepted; a head-broadcast mask
        (B, 1, Sq, Sk) is reused across heads without materializing H copies.

    Returns:
      (context, attn): ((B, H, Sq, D), (B, H, Sq, Sk)), dtype of Q.
    """
    B, H, Sq, D = Q.shape
    Sk = K.shape[2]
    BH = B * H

    # Collapse (B, H) into one leading axis.
    q = Q.reshape(BH, Sq, D)
    k = K.reshape(BH, Sk, D)
    v = V.reshape(BH, Sk, D)

    mask = attn_mask
    if mask.dtype != jnp.bool_:
        mask = mask != 0
    if mask.ndim == 2:
        mask = mask[None, None]
    if mask.ndim != 4:
        raise ValueError("attn_mask must be 2-D (Sq, Sk) or 4-D (B/1, H/1, Sq, Sk)")

    if mask.shape[1] == 1 and H > 1:
        # Head-broadcast mask: keep a single copy per batch, index it by the
        # batch of the current head group -> H-fold less mask HBM traffic.
        head_shared = True
        mask_in = jnp.broadcast_to(mask, (B, 1, Sq, Sk)).reshape(B, Sq, Sk)
    else:
        head_shared = False
        mask_in = jnp.broadcast_to(mask, (B, H, Sq, Sk)).reshape(BH, Sq, Sk)

    # Generation-aware VMEM budget (128 MiB on v5e/v6e, 64 MiB per TC on v7x).
    itemsize = jnp.dtype(Q.dtype).itemsize
    vmem_cap = _vmem_capacity_bytes()
    vmem_limit = min((vmem_cap * 3) // 4, 128 * 1024 * 1024)
    budget = (vmem_limit * 85) // 100

    h_div = H if head_shared else BH
    block_h, block_q = _choose_tiles(BH, Sq, Sk, D, itemsize, budget, h_div)
    grid = (BH // block_h, Sq // block_q)  # head groups outer, q tiles inner

    if head_shared:
        mask_spec = pl.BlockSpec(
            (1, block_q, Sk), lambda g, i: (g * block_h // H, i, 0)
        )
    else:
        mask_spec = pl.BlockSpec((block_h, block_q, Sk), lambda g, i: (g, i, 0))

    ctx, attn = pl.pallas_call(
        _attention_kernel,
        out_shape=(
            jax.ShapeDtypeStruct((BH, Sq, D), Q.dtype),
            jax.ShapeDtypeStruct((BH, Sq, Sk), Q.dtype),
        ),
        grid_spec=pltpu.PrefetchScalarGridSpec(
            num_scalar_prefetch=0,
            grid=grid,
            in_specs=[
                pl.BlockSpec((block_h, block_q, D), lambda g, i: (g, i, 0)),
                # K/V: constant block index over the inner q axis => stay
                # resident in VMEM for the whole head group (no re-DMA).
                pl.BlockSpec((block_h, Sk, D), lambda g, i: (g, 0, 0)),
                pl.BlockSpec((block_h, Sk, D), lambda g, i: (g, 0, 0)),
                mask_spec,
            ],
            out_specs=[
                pl.BlockSpec((block_h, block_q, D), lambda g, i: (g, i, 0)),
                pl.BlockSpec((block_h, block_q, Sk), lambda g, i: (g, i, 0)),
            ],
        ),
        compiler_params=pltpu.CompilerParams(
            # Both axes independent -> megacore / v7x dual-TC sharding.
            dimension_semantics=("parallel", "parallel"),
            vmem_limit_bytes=int(vmem_limit),
        ),
    )(q, k, v, mask_in)

    return ctx.reshape(B, H, Sq, D), attn.reshape(B, H, Sq, Sk)


def _reference(Q, K, V, attn_mask):
    """Plain-JAX reference mirroring the PyTorch forward."""
    d_k = K.shape[-1]
    scores = jnp.einsum("bhqd,bhkd->bhqk", Q, K) / jnp.sqrt(jnp.float32(d_k))
    scores = jnp.where(attn_mask, -1000000000.0, scores)
    attn = jax.nn.softmax(scores, axis=-1)
    context = jnp.einsum("bhqk,bhkd->bhqd", attn, V)
    return context, attn


if __name__ == "__main__":
    B, H, S, D = 2, 2, 8, 32  # batch, heads, seq, head_dim

    key = jax.random.PRNGKey(0)
    kq, kk, kv = jax.random.split(key, 3)
    Q = jax.random.normal(kq, (B, H, S, D), dtype=jnp.float32)
    K = jax.random.normal(kk, (B, H, S, D), dtype=jnp.float32)
    V = jax.random.normal(kv, (B, H, S, D), dtype=jnp.float32)

    # Causal-style boolean mask (True => masked out).
    causal = jnp.triu(jnp.ones((S, S), dtype=jnp.bool_), k=1)
    full_mask = jnp.broadcast_to(causal, (B, H, S, S))

    ctx_ref, attn_ref = _reference(Q, K, V, full_mask)

    # Path 1: full per-head (B, H, Sq, Sk) mask (the module's exact layout).
    context, attn = scaled_dot_product_attention(Q, K, V, full_mask)
    jax.block_until_ready((context, attn))
    assert jnp.allclose(context, ctx_ref, atol=1e-5, rtol=1e-5), "context mismatch"
    assert jnp.allclose(attn, attn_ref, atol=1e-5, rtol=1e-5), "attn mismatch"

    # Path 2: head-broadcast (B, 1, Sq, Sk) mask (shared-mask fast path).
    shared_mask = jnp.broadcast_to(causal, (B, 1, S, S))
    context2, attn2 = scaled_dot_product_attention(Q, K, V, shared_mask)
    jax.block_until_ready((context2, attn2))
    assert jnp.allclose(context2, ctx_ref, atol=1e-5, rtol=1e-5), "context mismatch (shared mask)"
    assert jnp.allclose(attn2, attn_ref, atol=1e-5, rtol=1e-5), "attn mismatch (shared mask)"

    print("KERNEL_OK")
</pallas_src>

<mosaic_0001>
module attributes {stable_mosaic.version = 11 : i64} {
  func.func @_attention_kernel(%arg0: i32, %arg1: i32, %arg2: memref<2x8x32xf32, #tpu.memory_space<vmem>>, %arg3: memref<2x8x32xf32, #tpu.memory_space<vmem>>, %arg4: memref<2x8x32xf32, #tpu.memory_space<vmem>>, %arg5: memref<2x8x8xi32, #tpu.memory_space<vmem>>, %arg6: memref<2x8x32xf32, #tpu.memory_space<vmem>>, %arg7: memref<2x8x8xf32, #tpu.memory_space<vmem>>) attributes {dimension_semantics = [#tpu.dimension_semantics<parallel>, #tpu.dimension_semantics<parallel>], iteration_bounds = array<i64: 2, 1>, scalar_prefetch = 0 : i64, scratch_operands = 0 : i64, tpu.core_type = #tpu.core_type<tc>, window_params = [{transform_indices = @transform_0, window_bounds = array<i64: 2, 8, 32>}, {transform_indices = @transform_1, window_bounds = array<i64: 2, 8, 32>}, {transform_indices = @transform_2, window_bounds = array<i64: 2, 8, 32>}, {transform_indices = @transform_3, window_bounds = array<i64: 2, 8, 8>}, {transform_indices = @transform_4, window_bounds = array<i64: 2, 8, 32>}, {transform_indices = @transform_5, window_bounds = array<i64: 2, 8, 8>}]} {
    %c0 = arith.constant 0 : index
    %c0_0 = arith.constant 0 : index
    %c0_1 = arith.constant 0 : index
    %0 = vector.load %arg2[%c0, %c0_0, %c0_1] : memref<2x8x32xf32, #tpu.memory_space<vmem>>, vector<2x8x32xf32>
    %c0_2 = arith.constant 0 : index
    %c0_3 = arith.constant 0 : index
    %c0_4 = arith.constant 0 : index
    %1 = vector.load %arg3[%c0_2, %c0_3, %c0_4] : memref<2x8x32xf32, #tpu.memory_space<vmem>>, vector<2x8x32xf32>
    %c0_5 = arith.constant 0 : index
    %c0_6 = arith.constant 0 : index
    %c0_7 = arith.constant 0 : index
    %2 = vector.load %arg4[%c0_5, %c0_6, %c0_7] : memref<2x8x32xf32, #tpu.memory_space<vmem>>, vector<2x8x32xf32>
    %c0_8 = arith.constant 0 : index
    %c0_9 = arith.constant 0 : index
    %c0_10 = arith.constant 0 : index
    %3 = vector.load %arg5[%c0_8, %c0_9, %c0_10] : memref<2x8x8xi32, #tpu.memory_space<vmem>>, vector<2x8x8xi32>
    %cst = arith.constant dense<0> : vector<2x8x8xi32>
    %4 = arith.cmpi ne, %3, %cst : vector<2x8x8xi32>
    %cst_11 = arith.constant 0.176776692 : f32
    %5 = vector.broadcast %cst_11 : f32 to vector<2x8x32xf32>
    %6 = arith.mulf %0, %5 : vector<2x8x32xf32>
    %cst_12 = arith.constant dense<0.000000e+00> : vector<2x8x8xf32>
    %7 = tpu.matmul %6, %1, %cst_12 {dimension_numbers = #tpu.dot_dimension_numbers<[2], [2], [1], [1], [0, 0, 0, 1, 1, 1], [0], [0]>} : vector<2x8x32xf32>, vector<2x8x32xf32>, vector<2x8x8xf32> -> vector<2x8x8xf32>
    %cst_13 = arith.constant -1.000000e+09 : f32
    %8 = vector.broadcast %cst_13 : f32 to vector<2x8x8xf32>
    %9 = arith.select %4, %8, %7 : vector<2x8x8xi1>, vector<2x8x8xf32>
    %cst_14 = arith.constant dense<0xFF800000> : vector<2x8xf32>
    %10 = vector.multi_reduction <maximumf>, %9, %cst_14 [2] : vector<2x8x8xf32> to vector<2x8xf32>
    %11 = vector.shape_cast %10 : vector<2x8xf32> to vector<2x8x1xf32>
    %12 = vector.broadcast %11 : vector<2x8x1xf32> to vector<2x8x8xf32>
    %13 = arith.subf %9, %12 : vector<2x8x8xf32>
    %14 = math.exp %13 : vector<2x8x8xf32>
    %cst_15 = arith.constant dense<0.000000e+00> : vector<2x8xf32>
    %15 = vector.multi_reduction <add>, %14, %cst_15 [2] : vector<2x8x8xf32> to vector<2x8xf32>
    %16 = vector.shape_cast %15 : vector<2x8xf32> to vector<2x8x1xf32>
    %17 = tpu.reciprocal %16 {approx = true} : vector<2x8x1xf32> -> vector<2x8x1xf32>
    %18 = arith.mulf %16, %17 : vector<2x8x1xf32>
    %cst_16 = arith.constant 2.000000e+00 : f32
    %19 = vector.broadcast %cst_16 : f32 to vector<2x8x1xf32>
    %20 = arith.subf %19, %18 : vector<2x8x1xf32>
    %21 = arith.mulf %17, %20 : vector<2x8x1xf32>
    %22 = vector.broadcast %21 : vector<2x8x1xf32> to vector<2x8x8xf32>
    %23 = arith.mulf %14, %22 : vector<2x8x8xf32>
    %c0_17 = arith.constant 0 : index
    %c0_18 = arith.constant 0 : index
    %c0_19 = arith.constant 0 : index
    %24 = vector.load %arg7[%c0_17, %c0_18, %c0_19] : memref<2x8x8xf32, #tpu.memory_space<vmem>>, vector<2x8x8xf32>
    tpu.vector_store %arg7[%c0_17, %c0_18, %c0_19], %23 {strides = array<i32>} : memref<2x8x8xf32, #tpu.memory_space<vmem>>, vector<2x8x8xf32>,
    %cst_20 = arith.constant dense<0.000000e+00> : vector<2x8x32xf32>
    %25 = tpu.matmul %23, %2, %cst_20 {dimension_numbers = #tpu.dot_dimension_numbers<[2], [1], [1], [2], [0, 0, 0, 1, 1, 2], [0], [0]>} : vector<2x8x8xf32>, vector<2x8x32xf32>, vector<2x8x32xf32> -> vector<2x8x32xf32>
    %c0_21 = arith.constant 0 : index
    %c0_22 = arith.constant 0 : index
    %c0_23 = arith.constant 0 : index
    %26 = vector.load %arg6[%c0_21, %c0_22, %c0_23] : memref<2x8x32xf32, #tpu.memory_space<vmem>>, vector<2x8x32xf32>
    tpu.vector_store %arg6[%c0_21, %c0_22, %c0_23], %25 {strides = array<i32>} : memref<2x8x32xf32, #tpu.memory_space<vmem>>, vector<2x8x32xf32>,
    return
  }
  func.func @transform_0(%arg0: i32, %arg1: i32) -> (i32, i32, i32) {
    %c0_i32 = arith.constant 0 : i32
    %c0_i32_0 = arith.constant 0 : i32
    return %arg0, %arg1, %c0_i32 : i32, i32, i32
  }
  func.func @transform_1(%arg0: i32, %arg1: i32) -> (i32, i32, i32) {
    %c0_i32 = arith.constant 0 : i32
    %c0_i32_0 = arith.constant 0 : i32
    %c0_i32_1 = arith.constant 0 : i32
    return %arg0, %c0_i32, %c0_i32_0 : i32, i32, i32
  }
  func.func @transform_2(%arg0: i32, %arg1: i32) -> (i32, i32, i32) {
    %c0_i32 = arith.constant 0 : i32
    %c0_i32_0 = arith.constant 0 : i32
    %c0_i32_1 = arith.constant 0 : i32
    return %arg0, %c0_i32, %c0_i32_0 : i32, i32, i32
  }
  func.func @transform_3(%arg0: i32, %arg1: i32) -> (i32, i32, i32) {
    %c0_i32 = arith.constant 0 : i32
    %c0_i32_0 = arith.constant 0 : i32
    return %arg0, %arg1, %c0_i32 : i32, i32, i32
  }
  func.func @transform_4(%arg0: i32, %arg1: i32) -> (i32, i32, i32) {
    %c0_i32 = arith.constant 0 : i32
    %c0_i32_0 = arith.constant 0 : i32
    return %arg0, %arg1, %c0_i32 : i32, i32, i32
  }
  func.func @transform_5(%arg0: i32, %arg1: i32) -> (i32, i32, i32) {
    %c0_i32 = arith.constant 0 : i32
    %c0_i32_0 = arith.constant 0 : i32
    return %arg0, %arg1, %c0_i32 : i32, i32, i32
  }
}

</mosaic_0001>

<llo_original>
// kernel: tpu_custom_call.1
$region0: #{tpu_custom_call.1}
  #allocation0 [shape = 'u32[]', space=smem, size = 0x4, offset = 0x4, fixed_abs, tag = 'smem constant byte address 0x4 - core index']
  #allocation1 [shape = 'u32[144,128]{1,0:T(1,128)}', space=vmem, size = 0x12000, scoped, tag = 'internal scratch']
  %s0 = inlined_call_operand.vmem [shape: f32[4,8,32], index: 0, kind: input, shape index: {}]
  %s1 = inlined_call_operand.hbm [shape: f32[4,8,32], index: 1, kind: input, shape index: {}]
  %s2 = inlined_call_operand.hbm [shape: f32[4,8,32], index: 2, kind: input, shape index: {}]
  %s3 = inlined_call_operand.vmem [shape: s32[4,8,8], index: 3, kind: input, shape index: {}]
  %s4 = inlined_call_operand.hbm [shape: f32[4,8,32], index: 4, kind: output, shape index: {0}]
  %s5 = inlined_call_operand.hbm [shape: f32[4,8,8], index: 5, kind: output, shape index: {1}]
  %6 = xla_tuple %s4, %s5
  %s7 = sld [smem:[#allocation0]]
  $region65: #{tpu_custom_call.1} parent=0
    _
  %s9 = ssub.s32 1, %s7
  %s10 = scalar_select 0, %s9, %s7
  $region1: #{tpu_custom_call.1} parent=0
    #allocation2 [shape = 'u8[16384]{0}', space=vmem, size = 0x4000, scoped, tag = 'input window, operand 1']
    #allocation3 [shape = 's32[2]{0}', space=sflag, size = 0x8, scoped, tag = 'scoped memory for tpu_custom_call.1']
    #allocation4 [shape = 's32[2]{0}', space=sflag, size = 0x8, scoped, tag = 'scoped memory for tpu_custom_call.1']
    #allocation5 [shape = 'u8[16384]{0}', space=vmem, size = 0x4000, scoped, tag = 'input window, operand 2']
    #allocation6 [shape = 's32[2]{0}', space=sflag, size = 0x8, scoped, tag = 'scoped memory for tpu_custom_call.1']
    #allocation7 [shape = 'u8[16384]{0}', space=vmem, size = 0x4000, scoped, tag = 'output window, operand 0']
    #allocation8 [shape = 'u8[16384]{0}', space=vmem, size = 0x4000, scoped, tag = 'output window, operand 1']
    #allocation9 [shape = 's32[2]{0}', space=sflag, size = 0x8, scoped, tag = 'scoped memory for tpu_custom_call.1']
    %11 = vsyncpa [#allocation3], 0
    %s12 = scalar_lea.sflag [#allocation3], 1
    %13 = vsyncpa %s12, 0
    %14 = vsyncpa [#allocation6], 0
    %s15 = scalar_lea.sflag [#allocation6], 1
    %16 = vsyncpa %s15, 0
    %17 = vsyncpa [#allocation4], 0
    %s18 = scalar_lea.sflag [#allocation4], 1
    %19 = vsyncpa %s18, 0
    %20 = vsyncpa [#allocation9], 0
    %s21 = scalar_lea.sflag [#allocation9], 1
    %22 = vsyncpa %s21, 0
    loop: start=0, step=1, limit=4
    $region2: #{tpu_custom_call.1} parent=1 // loop_pre_header
      _
    $region3: #{tpu_custom_call.1} parent=1 // loop_header
      %s24 = sphi 0, %s28
      %p25 = scmp.ge.s32.totalorder %s24, 4
      %s31 = sphi 0, %s43
      %s32 = sphi 0, %s39
      %s33 = sphi 0, %s31
      %s34 = sphi 0, %s32
      %s35 = sphi 0, %s33
      %s36 = sphi 0, %s34
      %s48 = sphi 0, %s50
      %s51 = sphi 0, %s48
      %s52 = sphi 0, %s51
      %s68 = sphi 0, %s52
      %s74 = sphi 0, %s76
      %s77 = sphi 0, %s74
      %s78 = sphi 0, %s77
      %s94 = sphi 0, %s78
      %s100 = sphi 0, %s102
      %s103 = sphi 0, %s100
      %s104 = sphi 0, %s103
      %s120 = sphi 0, %s104
      %s128 = sphi 0, %s130
      %s131 = sphi 0, %s128
      %s132 = sphi 0, %s131
      %s148 = sphi 0, %s132
      %s156 = sphi 0, %s158
      %s159 = sphi 0, %s156
      %s160 = sphi 0, %s159
      %s176 = sphi 0, %s160
      %s184 = sphi 0, %s186
      %s187 = sphi 0, %s184
      %s188 = sphi 0, %s187
      %s204 = sphi 0, %s188
    $region4: #{tpu_custom_call.1} parent=1 // loop_header_branch
      %27 = sbr.rel (%p25) target = $region8
    $region5: #{tpu_custom_call.1} parent=1 // loop_body
      %s29 = ssub.s32 %s24, 1
      %s30 = ssub.s32 %s24, 2
      %s37 = sadd.s32 1, %s32
      %p38 = scmp.ge.s32.totalorder %s37, 1
      %s39 = scalar_select %p38, 0, %s37
      %s40 = sadd.s32 1, %s31
      %s41 = scalar_select %p38, %s40, %s31
      %p42 = scmp.ge.s32.totalorder %s41, 2
      %s43 = scalar_select %p42, 0, %s41
      %s44 = ssub.s32 %s31, %s43
      %s45 = ssub.s32 %s32, %s39
      %s46 = sor.u32 %s44, %s45
      %p47 = scmp.eq.s32.totalorder %s46, 0
      %s49 = sadd.s32 %s48, 1
      %s50 = scalar_select %p47, %s48, %s49
      %p53 = pneg %p47
      %p54 = scmp.eq.s32.totalorder %s24, 1
      %p55 = por %p53, %p54
      %p56 = scmp.ne.s32.totalorder %s48, %s51
      %p57 = scmp.eq.s32.totalorder %s24, 0
      %p58 = por %p56, %p57
      %p59 = scmp.ne.s32.totalorder %s48, %s51
      %p60 = scmp.eq.s32.totalorder %s29, 1
      %p61 = por %p59, %p60
      %p62 = scmp.ne.s32.totalorder %s51, %s52
      %p63 = scmp.eq.s32.totalorder %s29, 0
      %p64 = por %p62, %p63
      %p65 = scmp.ne.s32.totalorder %s51, %s52
      %p66 = scmp.eq.s32.totalorder %s30, 1
      %p67 = por %p65, %p66
      %p69 = scmp.ne.s32.totalorder %s52, %s68
      %p70 = scmp.eq.s32.totalorder %s30, 0
      %p71 = por %p69, %p70
      %s72 = ssub.s32 %s31, %s43
      %p73 = scmp.eq.s32.totalorder %s72, 0
      %s75 = sadd.s32 %s74, 1
      %s76 = scalar_select %p73, %s74, %s75
      %p79 = pneg %p73
      %p80 = scmp.eq.s32.totalorder %s24, 1
      %p81 = por %p79, %p80
      %p82 = scmp.ne.s32.totalorder %s74, %s77
      %p83 = scmp.eq.s32.totalorder %s24, 0
      %p84 = por %p82, %p83
      %p85 = scmp.ne.s32.totalorder %s74, %s77
      %p86 = scmp.eq.s32.totalorder %s29, 1
      %p87 = por %p85, %p86
      %p88 = scmp.ne.s32.totalorder %s77, %s78
      %p89 = scmp.eq.s32.totalorder %s29, 0
      %p90 = por %p88, %p89
      %p91 = scmp.ne.s32.totalorder %s77, %s78
      %p92 = scmp.eq.s32.totalorder %s30, 1
      %p93 = por %p91, %p92
      %p95 = scmp.ne.s32.totalorder %s78, %s94
      %p96 = scmp.eq.s32.totalorder %s30, 0
      %p97 = por %p95, %p96
      %s98 = ssub.s32 %s31, %s43
      %p99 = scmp.eq.s32.totalorder %s98, 0
      %s101 = sadd.s32 %s100, 1
      %s102 = scalar_select %p99, %s100, %s101
      %p105 = pneg %p99
      %p106 = scmp.eq.s32.totalorder %s24, 1
      %p107 = por %p105, %p106
      %p108 = scmp.ne.s32.totalorder %s100, %s103
      %p109 = scmp.eq.s32.totalorder %s24, 0
      %p110 = por %p108, %p109
      %p111 = scmp.ne.s32.totalorder %s100, %s103
      %p112 = scmp.eq.s32.totalorder %s29, 1
      %p113 = por %p111, %p112
      %p114 = scmp.ne.s32.totalorder %s103, %s104
      %p115 = scmp.eq.s32.totalorder %s29, 0
      %p116 = por %p114, %p115
      %p117 = scmp.ne.s32.totalorder %s103, %s104
      %p118 = scmp.eq.s32.totalorder %s30, 1
      %p119 = por %p117, %p118
      %p121 = scmp.ne.s32.totalorder %s104, %s120
      %p122 = scmp.eq.s32.totalorder %s30, 0
      %p123 = por %p121, %p122
      %s124 = ssub.s32 %s31, %s43
      %s125 = ssub.s32 %s32, %s39
      %s126 = sor.u32 %s124, %s125
      %p127 = scmp.eq.s32.totalorder %s126, 0
      %s129 = sadd.s32 %s128, 1
      %s130 = scalar_select %p127, %s128, %s129
      %p133 = pneg %p127
      %p134 = scmp.eq.s32.totalorder %s24, 1
      %p135 = por %p133, %p134
      %p136 = scmp.ne.s32.totalorder %s128, %s131
      %p137 = scmp.eq.s32.totalorder %s24, 0
      %p138 = por %p136, %p137
      %p139 = scmp.ne.s32.totalorder %s128, %s131
      %p140 = scmp.eq.s32.totalorder %s29, 1
      %p141 = por %p139, %p140
      %p142 = scmp.ne.s32.totalorder %s131, %s132
      %p143 = scmp.eq.s32.totalorder %s29, 0
      %p144 = por %p142, %p143
      %p145 = scmp.ne.s32.totalorder %s131, %s132
      %p146 = scmp.eq.s32.totalorder %s30, 1
      %p147 = por %p145, %p146
      %p149 = scmp.ne.s32.totalorder %s132, %s148
      %p150 = scmp.eq.s32.totalorder %s30, 0
      %p151 = por %p149, %p150
      %s152 = ssub.s32 %s31, %s43
      %s153 = ssub.s32 %s32, %s39
      %s154 = sor.u32 %s152, %s153
      %p155 = scmp.eq.s32.totalorder %s154, 0
      %s157 = sadd.s32 %s156, 1
      %s158 = scalar_select %p155, %s156, %s157
      %p161 = pneg %p155
      %p162 = scmp.eq.s32.totalorder %s24, 1
      %p163 = por %p161, %p162
      %p164 = scmp.ne.s32.totalorder %s156, %s159
      %p165 = scmp.eq.s32.totalorder %s24, 0
      %p166 = por %p164, %p165
      %p167 = scmp.ne.s32.totalorder %s156, %s159
      %p168 = scmp.eq.s32.totalorder %s29, 1
      %p169 = por %p167, %p168
      %p170 = scmp.ne.s32.totalorder %s159, %s160
      %p171 = scmp.eq.s32.totalorder %s29, 0
      %p172 = por %p170, %p171
      %p173 = scmp.ne.s32.totalorder %s159, %s160
      %p174 = scmp.eq.s32.totalorder %s30, 1
      %p175 = por %p173, %p174
      %p177 = scmp.ne.s32.totalorder %s160, %s176
      %p178 = scmp.eq.s32.totalorder %s30, 0
      %p179 = por %p177, %p178
      %s180 = ssub.s32 %s31, %s43
      %s181 = ssub.s32 %s32, %s39
      %s182 = sor.u32 %s180, %s181
      %p183 = scmp.eq.s32.totalorder %s182, 0
      %s185 = sadd.s32 %s184, 1
      %s186 = scalar_select %p183, %s184, %s185
      %p189 = pneg %p183
      %p190 = scmp.eq.s32.totalorder %s24, 1
      %p191 = por %p189, %p190
      %p192 = scmp.ne.s32.totalorder %s184, %s187
      %p193 = scmp.eq.s32.totalorder %s24, 0
      %p194 = por %p192, %p193
      %p195 = scmp.ne.s32.totalorder %s184, %s187
      %p196 = scmp.eq.s32.totalorder %s29, 1
      %p197 = por %p195, %p196
      %p198 = scmp.ne.s32.totalorder %s187, %s188
      %p199 = scmp.eq.s32.totalorder %s29, 0
      %p200 = por %p198, %p199
      %p201 = scmp.ne.s32.totalorder %s187, %s188
      %p202 = scmp.eq.s32.totalorder %s30, 1
      %p203 = por %p201, %p202
      %p205 = scmp.ne.s32.totalorder %s188, %s204
      %p206 = scmp.eq.s32.totalorder %s30, 0
      %p207 = por %p205, %p206
      %p208 = scmp.le.s32.totalorder 1, %s24
      %p209 = scmp.lt.s32.totalorder %s24, 3
      %p210 = pnand %p208, %p209
      %p211 = pneg %p210
      // Predicated region
      $region9: #{tpu_custom_call.1} parent=5 // pred_check
        _
      $region10: #{tpu_custom_call.1} parent=5 // pred_check_branch
        %213 = sbr.rel (%p210) target = $region12
      $region11: #{tpu_custom_call.1} parent=5 // pred_region
        %s214 = ssub.s32 %s24, 1
      $region12: #{tpu_custom_call.1} parent=5 // pred_fallthru
        _
      %p215 = scmp.lt.s32.totalorder %s24, 2
      // Predicated region
      $region13: #{tpu_custom_call.1} parent=5 // pred_check
        %p216 = pneg %p215
      $region14: #{tpu_custom_call.1} parent=5 // pred_check_branch
        %218 = sbr.rel (%p216) target = $region16
      $region15: #{tpu_custom_call.1} parent=5 // pred_region
        // Predicated region
        $region17: #{tpu_custom_call.1} parent=15 // pred_check
          %p219 = pneg %p58
        $region18: #{tpu_custom_call.1} parent=15 // pred_check_branch
          %221 = sbr.rel (%p219) target = $region20
        $region19: #{tpu_custom_call.1} parent=15 // pred_region
          %s222 = smul.u32 2, %s31
          %p223 = scmp.lt.s32.totalorder %s222, 3
          %s224 = scalar_select %p223, %s222, 3
          %p225 = scmp.lt.s32.totalorder %s32, 0
          %s226 = scalar_select %p225, %s32, 0
          %s227 = sadd.s32 %s226, %s224
          %s228 = smul.addr %s227, 8
          %s229 = scalar_lea.vmem %s0, %s228
          %s230 = smul.u32 2, %s31
        $region20: #{tpu_custom_call.1} parent=15 // pred_fallthru
          _
        // Predicated region
        $region21: #{tpu_custom_call.1} parent=15 // pred_check
          %p231 = pneg %p84
        $region22: #{tpu_custom_call.1} parent=15 // pred_check_branch
          %233 = sbr.rel (%p231) target = $region24
        $region23: #{tpu_custom_call.1} parent=15 // pred_region
          %s234 = sand.u32 %s74, 1
          %s235 = scalar_lea.sflag [#allocation3], %s234
          %s236 = sand.u32 %s74, 1
          %s237 = smul.addr %s236, 16
          %s238 = scalar_lea.vmem [#allocation2], %s237
          %s239 = smul.u32 2, %s31
          %s241 = ssub.s32 256, 256
          %242 = vsyncadd %s235, %s241
          %s243 = smul.addr %s239, 128
          %s244 = scalar_lea.hbm %s1, %s243
          %s245 = sshll.u32 %s238, 4
          %s246 = int_to_ptr.vmem [resolvable:$true] %s245
          %251 = dma.hbm_to_vmem [thread:$0]  %s244, 256, %s246, %s235, 128, 128, 8
        $region24: #{tpu_custom_call.1} parent=15 // pred_fallthru
          _
        // Predicated region
        $region25: #{tpu_custom_call.1} parent=15 // pred_check
          %p252 = pneg %p110
        $region26: #{tpu_custom_call.1} parent=15 // pred_check_branch
          %254 = sbr.rel (%p252) target = $region28
        $region27: #{tpu_custom_call.1} parent=15 // pred_region
          %s255 = sand.u32 %s100, 1
          %s256 = scalar_lea.sflag [#allocation6], %s255
          %s257 = sand.u32 %s100, 1
          %s258 = smul.addr %s257, 16
          %s259 = scalar_lea.vmem [#allocation5], %s258
          %s260 = smul.u32 2, %s31
          %s262 = ssub.s32 256, 256
          %263 = vsyncadd %s256, %s262
          %s264 = smul.addr %s260, 128
          %s265 = scalar_lea.hbm %s2, %s264
          %s266 = sshll.u32 %s259, 4
          %s267 = int_to_ptr.vmem [resolvable:$true] %s266
          %272 = dma.hbm_to_vmem [thread:$0]  %s265, 256, %s267, %s256, 128, 128, 8
        $region28: #{tpu_custom_call.1} parent=15 // pred_fallthru
          _
        // Predicated region
        $region29: #{tpu_custom_call.1} parent=15 // pred_check
          %p273 = pneg %p138
        $region30: #{tpu_custom_call.1} parent=15 // pred_check_branch
          %275 = sbr.rel (%p273) target = $region32
        $region31: #{tpu_custom_call.1} parent=15 // pred_region
          %s276 = smul.u32 2, %s31
          %p277 = scmp.lt.s32.totalorder %s276, 3
          %s278 = scalar_select %p277, %s276, 3
          %p279 = scmp.lt.s32.totalorder %s32, 0
          %s280 = scalar_select %p279, %s32, 0
          %s281 = sadd.s32 %s280, %s278
          %s282 = smul.addr %s281, 8
          %s283 = scalar_lea.vmem %s3, %s282
          %s284 = smul.u32 2, %s31
        $region32: #{tpu_custom_call.1} parent=15 // pred_fallthru
          _
      $region16: #{tpu_custom_call.1} parent=5 // pred_fallthru
        _
      %p285 = scmp.le.s32.totalorder 1, %s24
      %p286 = scmp.lt.s32.totalorder %s24, 3
      %p287 = pnand %p285, %p286
      %p288 = pneg %p287
      // Predicated region
      $region33: #{tpu_custom_call.1} parent=5 // pred_check
        _
      $region34: #{tpu_custom_call.1} parent=5 // pred_check_branch
        %290 = sbr.rel (%p287) target = $region36
      $region35: #{tpu_custom_call.1} parent=5 // pred_region
        %s291 = ssub.s32 %s24, 1
        %s292 = sand.u32 %s77, 1
        %s293 = scalar_lea.sflag [#allocation3], %s292
        %s294 = sand.u32 %s77, 1
        %s295 = smul.addr %s294, 16
        %s296 = scalar_lea.vmem [#allocation2], %s295
        // Predicated region
        $region37: #{tpu_custom_call.1} parent=35 // pred_check
          %p297 = pneg %p90
        $region38: #{tpu_custom_call.1} parent=35 // pred_check_branch
          %299 = sbr.rel (%p297) target = $region40
        $region39: #{tpu_custom_call.1} parent=35 // pred_region
          %300 = dma.done %s293, 256
        $region40: #{tpu_custom_call.1} parent=35 // pred_fallthru
          _
        %s301 = sand.u32 %s103, 1
        %s302 = scalar_lea.sflag [#allocation6], %s301
        %s303 = sand.u32 %s103, 1
        %s304 = smul.addr %s303, 16
        %s305 = scalar_lea.vmem [#allocation5], %s304
        // Predicated region
        $region41: #{tpu_custom_call.1} parent=35 // pred_check
          %p306 = pneg %p116
        $region42: #{tpu_custom_call.1} parent=35 // pred_check_branch
          %308 = sbr.rel (%p306) target = $region44
        $region43: #{tpu_custom_call.1} parent=35 // pred_region
          %309 = dma.done %s302, 256
        $region44: #{tpu_custom_call.1} parent=35 // pred_fallthru
          _
        %s310 = smul.u32 2, %s33
        %p311 = scmp.lt.s32.totalorder %s310, 3
        %s312 = scalar_select %p311, %s310, 3
        %p313 = scmp.lt.s32.totalorder %s34, 0
        %s314 = scalar_select %p313, %s34, 0
        %s315 = sadd.s32 %s314, %s312
        %s316 = smul.addr %s315, 8
        %s317 = scalar_lea.vmem %s0, %s316
        %p318 = pneg %p64
        %p319 = pneg %p61
        %s320 = sand.u32 %s77, 1
        %s321 = scalar_lea.sflag [#allocation3], %s320
        %s322 = sand.u32 %s77, 1
        %s323 = smul.addr %s322, 16
        %s324 = scalar_lea.vmem [#allocation2], %s323
        %p325 = pneg %p90
        %p326 = pneg %p87
        %s327 = sand.u32 %s103, 1
        %s328 = scalar_lea.sflag [#allocation6], %s327
        %s329 = sand.u32 %s103, 1
        %s330 = smul.addr %s329, 16
        %s331 = scalar_lea.vmem [#allocation5], %s330
        %p332 = pneg %p116
        %p333 = pneg %p113
        %s334 = smul.u32 2, %s33
        %p335 = scmp.lt.s32.totalorder %s334, 3
        %s336 = scalar_select %p335, %s334, 3
        %p337 = scmp.lt.s32.totalorder %s34, 0
        %s338 = scalar_select %p337, %s34, 0
        %s339 = sadd.s32 %s338, %s336
        %s340 = smul.addr %s339, 8
        %s341 = scalar_lea.vmem %s3, %s340
        %p342 = pneg %p144
        %p343 = pneg %p141
        %p344 = pneg %p172
        %p345 = pneg %p169
        %s346 = sand.u32 %s159, 1
        %s347 = scalar_lea.sflag [#allocation4], %s346
        %s348 = sand.u32 %s159, 1
        %s349 = smul.addr %s348, 16
        %s350 = scalar_lea.vmem [#allocation7], %s349
        %p351 = pneg %p200
        %p352 = pneg %p197
        %s353 = sand.u32 %s187, 1
        %s354 = scalar_lea.sflag [#allocation9], %s353
        %s355 = sand.u32 %s187, 1
        %s356 = smul.addr %s355, 16
        %s357 = scalar_lea.vmem [#allocation8], %s356
        %s358 = smul.u32 2, %s33
        %p359 = scmp.lt.s32.totalorder %s358, 3
        %s360 = scalar_select %p359, %s358, 3
        %p361 = scmp.lt.s32.totalorder %s34, 0
        %s362 = scalar_select %p361, %s34, 0
        %s363 = sadd.s32 %s362, %s360
        %s364 = smul.addr %s363, 8
        %s365 = scalar_lea.vmem %s0, %s364
        %s366 = smul.u32 2, %s33
        %s367 = smul.u32 2, %s33
        %s368 = smul.u32 2, %s33
        %s369 = smul.u32 2, %s33
        %p370 = scmp.lt.s32.totalorder %s369, 3
        %s371 = scalar_select %p370, %s369, 3
        %p372 = scmp.lt.s32.totalorder %s34, 0
        %s373 = scalar_select %p372, %s34, 0
        %s374 = sadd.s32 %s373, %s371
        %s375 = smul.addr %s374, 8
        %s376 = scalar_lea.vmem %s3, %s375
        %s377 = smul.u32 2, %s33
        %s378 = smul.u32 2, %s33
        %s379 = smul.u32 2, %s33
        %v380 = vld [vmem:[%s365] sm:$0xff]
        %v381 = vld [vmem:[%s365 + $0x8] sm:$0xff]
        %v382 = vld [vmem:[%s296] sm:$0xff]
        %v383 = vld [vmem:[%s296 + $0x8] sm:$0xff]
        %v384 = vld [vmem:[%s305] sm:$0xff]
        %v385 = vld [vmem:[%s305 + $0x8] sm:$0xff]
        %v386 = vld [vmem:[%s376] sm:$0xff]
        %v387 = vld [vmem:[%s376 + $0x8] sm:$0xff]
        %vm388 = vcmp.ne.s32.totalorder %v386, 0
        %vm389 = vcmp.ne.s32.totalorder %v387, 0
        %v390 = vmul.f32 %v380, 0.17677669
        %v391 = vmul.f32 %v381, 0.17677669
        %vm392 = vcmask 261120
        %v394 = vsel %vm392, %v390, 0
        %v397 = vsel %vm392, %v382, 0
        %399 = vmatprep.subr.mxu0 0.0
        %400 = vmatpush1.xpose.msra.mxu0 %v397
        %401 = vmatprep.subr.mxu0 0.0
        %402 = vmatpush1.xpose.msra.mxu0 0.0
        %403 = vmatprep.subr.mxu0 0.0
        %404 = vmatpush1.xpose.msra.mxu0 0.0
        %405 = vmatprep.subr.mxu0 0.0
        %406 = vmatpush1.xpose.msra.mxu0 0.0
        %407 = vmatprep.subr.mxu0 0.0
        %408 = vmatpush1.xpose.msra.mxu0 0.0
        %409 = vmatprep.subr.mxu0 0.0
        %410 = vmatpush1.xpose.msra.mxu0 0.0
        %411 = vmatprep.subr.mxu0 0.0
        %412 = vmatpush1.xpose.msra.mxu0 0.0
        %413 = vmatprep.subr.mxu0 0.0
        %414 = vmatpush1.xpose.msra.mxu0 0.0
        %415 = vmatprep.subr.mxu0 0.0
        %416 = vmatpush1.xpose.msra.mxu0 0.0
        %417 = vmatprep.subr.mxu0 0.0
        %418 = vmatpush1.xpose.msra.mxu0 0.0
        %419 = vmatprep.subr.mxu0 0.0
        %420 = vmatpush1.xpose.msra.mxu0 0.0
        %421 = vmatprep.subr.mxu0 0.0
        %422 = vmatpush1.xpose.msra.mxu0 0.0
        %423 = vmatprep.subr.mxu0 0.0
        %424 = vmatpush1.xpose.msra.mxu0 0.0
        %425 = vmatprep.subr.mxu0 0.0
        %426 = vmatpush1.xpose.msra.mxu0 0.0
        %427 = vmatprep.subr.mxu0 0.0
        %428 = vmatpush1.xpose.msra.mxu0 0.0
        %429 = vmatprep.subr.mxu0 0.0
        %430 = vmatpush1.xpose.msra.mxu0 0.0
        %431 = vmatprep.subr.mxu0 0.0
        %432 = vmatpush1.xpose.msra.mxu0 0.0
        %433 = vmatprep.subr.mxu0 0.0
        %434 = vmatpush1.xpose.msra.mxu0 0.0
        %435 = vmatprep.subr.mxu0 0.0
        %436 = vmatpush1.xpose.msra.mxu0 0.0
        %437 = vmatprep.subr.mxu0 0.0
        %438 = vmatpush1.xpose.msra.mxu0 0.0
        %439 = vmatprep.subr.mxu0 0.0
        %440 = vmatpush1.xpose.msra.mxu0 0.0
        %441 = vmatprep.subr.mxu0 0.0
        %442 = vmatpush1.xpose.msra.mxu0 0.0
        %443 = vmatprep.subr.mxu0 0.0
        %444 = vmatpush1.xpose.msra.mxu0 0.0
        %445 = vmatprep.subr.mxu0 0.0
        %446 = vmatpush1.xpose.msra.mxu0 0.0
        %447 = vmatprep.subr.mxu0 0.0
        %448 = vmatpush1.xpose.msra.mxu0 0.0
        %449 = vmatprep.subr.mxu0 0.0
        %450 = vmatpush1.xpose.msra.mxu0 0.0
        %451 = vmatprep.subr.mxu0 0.0
        %452 = vmatpush1.xpose.msra.mxu0 0.0
        %453 = vmatprep.subr.mxu0 0.0
        %454 = vmatpush1.xpose.msra.mxu0 0.0
        %455 = vmatprep.subr.mxu0 0.0
        %456 = vmatpush1.xpose.msra.mxu0 0.0
        %457 = vmatprep.subr.mxu0 0.0
        %458 = vmatpush1.xpose.msra.mxu0 0.0
        %459 = vmatprep.subr.mxu0 0.0
        %460 = vmatpush1.xpose.msra.mxu0 0.0
        %461 = vmatprep.subr.mxu0 0.0
        %462 = vmatpush1.xpose.msra.mxu0 0.0
        %463 = vmatprep.mubr.f32.mxu0 0.0
        %464 = vmatmul.mubr.f32.gmra.mrb[0].mxu0 %v394
        %v465 = vpop.f32.mrb[0].mxu0
        %v466 = vadd.f32 0.0, %v465
        %v467 = vpop.f32.mrb[0].mxu0
        %468 = vdwg.mxu0
        %v470 = vsel %vm392, %v391, 0
        %v473 = vsel %vm392, %v383, 0
        %475 = vmatprep.subr.mxu0 0.0
        %476 = vmatpush1.xpose.msra.mxu0 %v473
        %477 = vmatprep.subr.mxu0 0.0
        %478 = vmatpush1.xpose.msra.mxu0 0.0
        %479 = vmatprep.subr.mxu0 0.0
        %480 = vmatpush1.xpose.msra.mxu0 0.0
        %481 = vmatprep.subr.mxu0 0.0
        %482 = vmatpush1.xpose.msra.mxu0 0.0
        %483 = vmatprep.subr.mxu0 0.0
        %484 = vmatpush1.xpose.msra.mxu0 0.0
        %485 = vmatprep.subr.mxu0 0.0
        %486 = vmatpush1.xpose.msra.mxu0 0.0
        %487 = vmatprep.subr.mxu0 0.0
        %488 = vmatpush1.xpose.msra.mxu0 0.0
        %489 = vmatprep.subr.mxu0 0.0
        %490 = vmatpush1.xpose.msra.mxu0 0.0
        %491 = vmatprep.subr.mxu0 0.0
        %492 = vmatpush1.xpose.msra.mxu0 0.0
        %493 = vmatprep.subr.mxu0 0.0
        %494 = vmatpush1.xpose.msra.mxu0 0.0
        %495 = vmatprep.subr.mxu0 0.0
        %496 = vmatpush1.xpose.msra.mxu0 0.0
        %497 = vmatprep.subr.mxu0 0.0
        %498 = vmatpush1.xpose.msra.mxu0 0.0
        %499 = vmatprep.subr.mxu0 0.0
        %500 = vmatpush1.xpose.msra.mxu0 0.0
        %501 = vmatprep.subr.mxu0 0.0
        %502 = vmatpush1.xpose.msra.mxu0 0.0
        %503 = vmatprep.subr.mxu0 0.0
        %504 = vmatpush1.xpose.msra.mxu0 0.0
        %505 = vmatprep.subr.mxu0 0.0
        %506 = vmatpush1.xpose.msra.mxu0 0.0
        %507 = vmatprep.subr.mxu0 0.0
        %508 = vmatpush1.xpose.msra.mxu0 0.0
        %509 = vmatprep.subr.mxu0 0.0
        %510 = vmatpush1.xpose.msra.mxu0 0.0
        %511 = vmatprep.subr.mxu0 0.0
        %512 = vmatpush1.xpose.msra.mxu0 0.0
        %513 = vmatprep.subr.mxu0 0.0
        %514 = vmatpush1.xpose.msra.mxu0 0.0
        %515 = vmatprep.subr.mxu0 0.0
        %516 = vmatpush1.xpose.msra.mxu0 0.0
        %517 = vmatprep.subr.mxu0 0.0
        %518 = vmatpush1.xpose.msra.mxu0 0.0
        %519 = vmatprep.subr.mxu0 0.0
        %520 = vmatpush1.xpose.msra.mxu0 0.0
        %521 = vmatprep.subr.mxu0 0.0
        %522 = vmatpush1.xpose.msra.mxu0 0.0
        %523 = vmatprep.subr.mxu0 0.0
        %524 = vmatpush1.xpose.msra.mxu0 0.0
        %525 = vmatprep.subr.mxu0 0.0
        %526 = vmatpush1.xpose.msra.mxu0 0.0
        %527 = vmatprep.subr.mxu0 0.0
        %528 = vmatpush1.xpose.msra.mxu0 0.0
        %529 = vmatprep.subr.mxu0 0.0
        %530 = vmatpush1.xpose.msra.mxu0 0.0
        %531 = vmatprep.subr.mxu0 0.0
        %532 = vmatpush1.xpose.msra.mxu0 0.0
        %533 = vmatprep.subr.mxu0 0.0
        %534 = vmatpush1.xpose.msra.mxu0 0.0
        %535 = vmatprep.subr.mxu0 0.0
        %536 = vmatpush1.xpose.msra.mxu0 0.0
        %537 = vmatprep.subr.mxu0 0.0
        %538 = vmatpush1.xpose.msra.mxu0 0.0
        %539 = vmatprep.mubr.f32.mxu0 0.0
        %540 = vmatmul.mubr.f32.gmra.mrb[0].mxu0 %v470
        %v541 = vpop.f32.mrb[0].mxu0
        %v542 = vadd.f32 0.0, %v541
        %v543 = vpop.f32.mrb[0].mxu0
        %544 = vdwg.mxu0
        %v545 = vsel %vm388, -1e+09, %v466
        %v546 = vsel %vm389, -1e+09, %v542
        %vm547 = vcmask 64512
        %v548 = vsel %vm547, %v545, -inf
        %549 = vmax.xlane.f32.xlu0 %v548
        %v550 = vpop.xlane.xlu0 %549
        %v551 = vsel %vm547, %v546, -inf
        %552 = vmax.xlane.f32.xlu0 %v551
        %v553 = vpop.xlane.xlu0 %552
        %v554 = vsub.f32 %v545, %v550
        %v555 = vsub.f32 %v546, %v553
        %v556 = vmul.f32 %v554, 1.442695
        %v557 = vpow.pop %v556
        %v558 = vmul.f32 %v555, 1.442695
        %v559 = vpow.pop %v558
        %v560 = vsel %vm547, %v557, 0.0
        %561 = vadd.xlane.f32.xlu0 %v560
        %v562 = vpop.xlane.xlu0 %561
        %v563 = vsel %vm547, %v559, 0.0
        %564 = vadd.xlane.f32.xlu0 %v563
        %v565 = vpop.xlane.xlu0 %564
        %v566 = vrcp.pop %v562
        %v567 = vrcp.pop %v565
        %v568 = vmul.f32 %v562, %v566
        %v569 = vmul.f32 %v565, %v567
        %v570 = vsub.f32 2.0, %v568
        %v571 = vsub.f32 2.0, %v569
        %v572 = vmul.f32 %v566, %v570
        %v573 = vmul.f32 %v567, %v571
        %v574 = vmul.f32 %v557, %v572
        %v575 = vmul.f32 %v559, %v573
        %576 = vst.msk [vmem:[%s357] sm:$0xff] %vm547, %v574
        %577 = vst.msk [vmem:[%s357 + $0x8] sm:$0xff] %vm547, %v575
        %v579 = vsel %vm547, %v574, 0
        %581 = vmatprep.subr.mxu0 0.0
        %582 = vmatpush1.msra.mxu0 %v384
        %583 = vmatprep.subr.mxu0 0.0
        %584 = vmatpush1.msra.mxu0 0.0
        %585 = vmatprep.subr.mxu0 0.0
        %586 = vmatpush1.msra.mxu0 0.0
        %587 = vmatprep.subr.mxu0 0.0
        %588 = vmatpush1.msra.mxu0 0.0
        %589 = vmatprep.subr.mxu0 0.0
        %590 = vmatpush1.msra.mxu0 0.0
        %591 = vmatprep.subr.mxu0 0.0
        %592 = vmatpush1.msra.mxu0 0.0
        %593 = vmatprep.subr.mxu0 0.0
        %594 = vmatpush1.msra.mxu0 0.0
        %595 = vmatprep.subr.mxu0 0.0
        %596 = vmatpush1.msra.mxu0 0.0
        %597 = vmatprep.subr.mxu0 0.0
        %598 = vmatpush1.msra.mxu0 0.0
        %599 = vmatprep.subr.mxu0 0.0
        %600 = vmatpush1.msra.mxu0 0.0
        %601 = vmatprep.subr.mxu0 0.0
        %602 = vmatpush1.msra.mxu0 0.0
        %603 = vmatprep.subr.mxu0 0.0
        %604 = vmatpush1.msra.mxu0 0.0
        %605 = vmatprep.subr.mxu0 0.0
        %606 = vmatpush1.msra.mxu0 0.0
        %607 = vmatprep.subr.mxu0 0.0
        %608 = vmatpush1.msra.mxu0 0.0
        %609 = vmatprep.subr.mxu0 0.0
        %610 = vmatpush1.msra.mxu0 0.0
        %611 = vmatprep.subr.mxu0 0.0
        %612 = vmatpush1.msra.mxu0 0.0
        %613 = vmatprep.subr.mxu0 0.0
        %614 = vmatpush1.msra.mxu0 0.0
        %615 = vmatprep.subr.mxu0 0.0
        %616 = vmatpush1.msra.mxu0 0.0
        %617 = vmatprep.subr.mxu0 0.0
        %618 = vmatpush1.msra.mxu0 0.0
        %619 = vmatprep.subr.mxu0 0.0
        %620 = vmatpush1.msra.mxu0 0.0
        %621 = vmatprep.subr.mxu0 0.0
        %622 = vmatpush1.msra.mxu0 0.0
        %623 = vmatprep.subr.mxu0 0.0
        %624 = vmatpush1.msra.mxu0 0.0
        %625 = vmatprep.subr.mxu0 0.0
        %626 = vmatpush1.msra.mxu0 0.0
        %627 = vmatprep.subr.mxu0 0.0
        %628 = vmatpush1.msra.mxu0 0.0
        %629 = vmatprep.subr.mxu0 0.0
        %630 = vmatpush1.msra.mxu0 0.0
        %631 = vmatprep.subr.mxu0 0.0
        %632 = vmatpush1.msra.mxu0 0.0
        %633 = vmatprep.subr.mxu0 0.0
        %634 = vmatpush1.msra.mxu0 0.0
        %635 = vmatprep.subr.mxu0 0.0
        %636 = vmatpush1.msra.mxu0 0.0
        %637 = vmatprep.subr.mxu0 0.0
        %638 = vmatpush1.msra.mxu0 0.0
        %639 = vmatprep.subr.mxu0 0.0
        %640 = vmatpush1.msra.mxu0 0.0
        %641 = vmatprep.subr.mxu0 0.0
        %642 = vmatpush1.msra.mxu0 0.0
        %643 = vmatprep.subr.mxu0 0.0
        %644 = vmatpush1.msra.mxu0 0.0
        %645 = vmatprep.mubr.f32.mxu0 0.0
        %646 = vmatmul.mubr.f32.gmra.mrb[0].mxu0 %v579
        %v647 = vpop.f32.mrb[0].mxu0
        %v648 = vadd.f32 0.0, %v647
        %v649 = vpop.f32.mrb[0].mxu0
        %650 = vdwg.mxu0
        %v652 = vsel %vm547, %v575, 0
        %654 = vmatprep.subr.mxu0 0.0
        %655 = vmatpush1.msra.mxu0 %v385
        %656 = vmatprep.subr.mxu0 0.0
        %657 = vmatpush1.msra.mxu0 0.0
        %658 = vmatprep.subr.mxu0 0.0
        %659 = vmatpush1.msra.mxu0 0.0
        %660 = vmatprep.subr.mxu0 0.0
        %661 = vmatpush1.msra.mxu0 0.0
        %662 = vmatprep.subr.mxu0 0.0
        %663 = vmatpush1.msra.mxu0 0.0
        %664 = vmatprep.subr.mxu0 0.0
        %665 = vmatpush1.msra.mxu0 0.0
        %666 = vmatprep.subr.mxu0 0.0
        %667 = vmatpush1.msra.mxu0 0.0
        %668 = vmatprep.subr.mxu0 0.0
        %669 = vmatpush1.msra.mxu0 0.0
        %670 = vmatprep.subr.mxu0 0.0
        %671 = vmatpush1.msra.mxu0 0.0
        %672 = vmatprep.subr.mxu0 0.0
        %673 = vmatpush1.msra.mxu0 0.0
        %674 = vmatprep.subr.mxu0 0.0
        %675 = vmatpush1.msra.mxu0 0.0
        %676 = vmatprep.subr.mxu0 0.0
        %677 = vmatpush1.msra.mxu0 0.0
        %678 = vmatprep.subr.mxu0 0.0
        %679 = vmatpush1.msra.mxu0 0.0
        %680 = vmatprep.subr.mxu0 0.0
        %681 = vmatpush1.msra.mxu0 0.0
        %682 = vmatprep.subr.mxu0 0.0
        %683 = vmatpush1.msra.mxu0 0.0
        %684 = vmatprep.subr.mxu0 0.0
        %685 = vmatpush1.msra.mxu0 0.0
        %686 = vmatprep.subr.mxu0 0.0
        %687 = vmatpush1.msra.mxu0 0.0
        %688 = vmatprep.subr.mxu0 0.0
        %689 = vmatpush1.msra.mxu0 0.0
        %690 = vmatprep.subr.mxu0 0.0
        %691 = vmatpush1.msra.mxu0 0.0
        %692 = vmatprep.subr.mxu0 0.0
        %693 = vmatpush1.msra.mxu0 0.0
        %694 = vmatprep.subr.mxu0 0.0
        %695 = vmatpush1.msra.mxu0 0.0
        %696 = vmatprep.subr.mxu0 0.0
        %697 = vmatpush1.msra.mxu0 0.0
        %698 = vmatprep.subr.mxu0 0.0
        %699 = vmatpush1.msra.mxu0 0.0
        %700 = vmatprep.subr.mxu0 0.0
        %701 = vmatpush1.msra.mxu0 0.0
        %702 = vmatprep.subr.mxu0 0.0
        %703 = vmatpush1.msra.mxu0 0.0
        %704 = vmatprep.subr.mxu0 0.0
        %705 = vmatpush1.msra.mxu0 0.0
        %706 = vmatprep.subr.mxu0 0.0
        %707 = vmatpush1.msra.mxu0 0.0
        %708 = vmatprep.subr.mxu0 0.0
        %709 = vmatpush1.msra.mxu0 0.0
        %710 = vmatprep.subr.mxu0 0.0
        %711 = vmatpush1.msra.mxu0 0.0
        %712 = vmatprep.subr.mxu0 0.0
        %713 = vmatpush1.msra.mxu0 0.0
        %714 = vmatprep.subr.mxu0 0.0
        %715 = vmatpush1.msra.mxu0 0.0
        %716 = vmatprep.subr.mxu0 0.0
        %717 = vmatpush1.msra.mxu0 0.0
        %718 = vmatprep.mubr.f32.mxu0 0.0
        %719 = vmatmul.mubr.f32.gmra.mrb[0].mxu0 %v652
        %v720 = vpop.f32.mrb[0].mxu0
        %v721 = vadd.f32 0.0, %v720
        %v722 = vpop.f32.mrb[0].mxu0
        %723 = vdwg.mxu0
        %724 = vst.msk [vmem:[%s350] sm:$0xff] %vm392, %v648
        %725 = vst.msk [vmem:[%s350 + $0x8] sm:$0xff] %vm392, %v721
        %s726 = sand.u32 %s159, 1
        %s727 = scalar_lea.sflag [#allocation4], %s726
        %s728 = sand.u32 %s159, 1
        %s729 = smul.addr %s728, 16
        %s730 = scalar_lea.vmem [#allocation7], %s729
        %s731 = sand.u32 %s187, 1
        %s732 = scalar_lea.sflag [#allocation9], %s731
        %s733 = sand.u32 %s187, 1
        %s734 = smul.addr %s733, 16
        %s735 = scalar_lea.vmem [#allocation8], %s734
        // Predicated region
        $region45: #{tpu_custom_call.1} parent=35 // pred_check
          %p736 = pneg %p169
        $region46: #{tpu_custom_call.1} parent=35 // pred_check_branch
          %738 = sbr.rel (%p736) target = $region48
        $region47: #{tpu_custom_call.1} parent=35 // pred_region
          %s739 = smul.u32 2, %s33
          %s741 = ssub.s32 256, 256
          %742 = vsyncadd %s727, %s741
          %s743 = sadd.s32 %s34, %s739
          %s744 = smul.addr %s743, 128
          %s745 = scalar_lea.hbm %s4, %s744
          %s746 = sshll.u32 %s730, 4
          %s747 = int_to_ptr.vmem [resolvable:$true] %s746
          %752 = dma.vmem_to_hbm [thread:$0]  %s747, 256, %s745, %s727, 128, 128, 8
        $region48: #{tpu_custom_call.1} parent=35 // pred_fallthru
          _
        // Predicated region
        $region49: #{tpu_custom_call.1} parent=35 // pred_check
          %p753 = pneg %p197
        $region50: #{tpu_custom_call.1} parent=35 // pred_check_branch
          %755 = sbr.rel (%p753) target = $region52
        $region51: #{tpu_custom_call.1} parent=35 // pred_region
          %s756 = smul.u32 2, %s33
          %s758 = ssub.s32 256, 256
          %759 = vsyncadd %s732, %s758
          %s760 = sadd.s32 %s34, %s756
          %s761 = smul.addr %s760, 128
          %s762 = scalar_lea.hbm %s5, %s761
          %s763 = sshll.u32 %s735, 4
          %s764 = int_to_ptr.vmem [resolvable:$true] %s763
          %769 = dma.vmem_to_hbm [thread:$0]  %s764, 256, %s762, %s732, 128, 128, 8
        $region52: #{tpu_custom_call.1} parent=35 // pred_fallthru
          _
      $region36: #{tpu_custom_call.1} parent=5 // pred_fallthru
        _
      %p770 = scmp.le.s32.totalorder 2, %s24
      // Predicated region
      $region53: #{tpu_custom_call.1} parent=5 // pred_check
        %p771 = pneg %p770
      $region54: #{tpu_custom_call.1} parent=5 // pred_check_branch
        %773 = sbr.rel (%p771) target = $region56
      $region55: #{tpu_custom_call.1} parent=5 // pred_region
        %s774 = ssub.s32 %s24, 2
        // Predicated region
        $region57: #{tpu_custom_call.1} parent=55 // pred_check
          %p775 = pneg %p175
        $region58: #{tpu_custom_call.1} parent=55 // pred_check_branch
          %777 = sbr.rel (%p775) target = $region60
        $region59: #{tpu_custom_call.1} parent=55 // pred_region
          %s778 = sand.u32 %s160, 1
          %s779 = scalar_lea.sflag [#allocation4], %s778
          %s780 = sand.u32 %s160, 1
          %s781 = smul.addr %s780, 16
          %s782 = scalar_lea.vmem [#allocation7], %s781
          %783 = dma.done %s779, 256
        $region60: #{tpu_custom_call.1} parent=55 // pred_fallthru
          _
        // Predicated region
        $region61: #{tpu_custom_call.1} parent=55 // pred_check
          %p784 = pneg %p203
        $region62: #{tpu_custom_call.1} parent=55 // pred_check_branch
          %786 = sbr.rel (%p784) target = $region64
        $region63: #{tpu_custom_call.1} parent=55 // pred_region
          %s787 = sand.u32 %s188, 1
          %s788 = scalar_lea.sflag [#allocation9], %s787
          %s789 = sand.u32 %s188, 1
          %s790 = smul.addr %s789, 16
          %s791 = scalar_lea.vmem [#allocation8], %s790
          %792 = dma.done %s788, 256
        $region64: #{tpu_custom_call.1} parent=55 // pred_fallthru
          _
      $region56: #{tpu_custom_call.1} parent=5 // pred_fallthru
        _
    $region6: #{tpu_custom_call.1} parent=1 // loop_footer
      %s28 = sadd.s32 1, %s24
    $region7: #{tpu_custom_call.1} parent=1 // loop_footer_branch
      %23 = sbr.rel target = $region3
    $region8: #{tpu_custom_call.1} parent=1 // loop_exit
      _
    %793 = vsyncpa [#allocation3], 1
    %s794 = scalar_lea.sflag [#allocation3], 1
    %795 = vsyncpa %s794, 1
    %796 = vsyncpa [#allocation6], 1
    %s797 = scalar_lea.sflag [#allocation6], 1
    %798 = vsyncpa %s797, 1
    %799 = vsyncpa [#allocation4], 1
    %s800 = scalar_lea.sflag [#allocation4], 1
    %801 = vsyncpa %s800, 1
    %802 = vsyncpa [#allocation9], 1
    %s803 = scalar_lea.sflag [#allocation9], 1
    %804 = vsyncpa %s803, 1

</llo_original>
